<compile_context>
chip_gen: v5e
topology: v5e:2x2
jax: 0.10.0
libtpu: 0.0.40
codegen_flags: <defaults>
</compile_context>

<pallas_src>
import jax
import jax.numpy as jnp
from jax.experimental import pallas as pl
from jax.experimental.pallas import tpu as pltpu


def _round_up(x, m):
    return ((x + m - 1) // m) * m


def _vmem_capacity_bytes():
    """Trace-time VMEM capacity query with a conservative (v7x) fallback."""
    try:
        info = pltpu.get_tpu_info()
        cap = getattr(info, "vmem_capacity_bytes", None)
        if cap:
            return int(cap)
    except Exception:
        pass
    return 64 * 1024 * 1024


def _rola_kernel(x_ref, wdT_ref, wuT_ref, out_ref):
    # x_ref:   (TM, H)  activation tile (pipelined)
    # wdT_ref: (H, R)   down_proj.weight pre-transposed (VMEM-resident)
    # wuT_ref: (R, H)   up_proj.weight   pre-transposed (VMEM-resident)
    # out_ref: (TM, H)
    x = x_ref[...]
    # down = x @ Wd^T -> (TM, R); f32 accumulation on the MXU.
    down = jnp.dot(x, wdT_ref[...], preferred_element_type=jnp.float32)
    # up = down @ Wu^T -> (TM, H); pop the MXU result directly in the output
    # dtype (no full-tile f32 temporary, no extra VPU cast pass).
    up = jnp.dot(down.astype(x.dtype), wuT_ref[...],
                 preferred_element_type=out_ref.dtype)
    out_ref[...] = x + up


def rola_adapter(x, w_down, w_up):
    """x: (..., H); w_down: (R, H); w_up: (H, R). Returns x + up(down(x))."""
    orig_shape = x.shape
    H = orig_shape[-1]
    R = w_down.shape[0]
    dtype = x.dtype
    dsize = jnp.dtype(dtype).itemsize

    x2d = x.reshape(-1, H)
    M = x2d.shape[0]

    # One-time wrapper-side transposes (hoisted out of the kernel).
    # NOTE: weights are cast to the activation dtype (bf16-LoRA convention);
    # for f32 activations with f32 weights this is exact.
    wd_t = jnp.transpose(w_down).astype(dtype)   # (H, R)
    wu_t = jnp.transpose(w_up).astype(dtype)     # (R, H)

    # ---- generation-aware VMEM budget --------------------------------------
    cap = _vmem_capacity_bytes()
    if cap >= 128 * 1024 * 1024:          # v5e / v6e: 128 MiB physical VMEM
        vmem_limit = 64 * 1024 * 1024
        vmem_budget = 56 * 1024 * 1024
    else:                                  # v7x (64 MiB per TC) or unknown
        vmem_limit = 48 * 1024 * 1024
        vmem_budget = 40 * 1024 * 1024

    # ---- row-tile sizing ----------------------------------------------------
    # Sublane packing for the activation dtype: 8 rows (f32), 16 (bf16), 32 (i8).
    row_align = max(8, 32 // dsize)

    # Weight buffers: 2 matrices x 2 pipeline buffers each (double-buffered by
    # the pipeline even though their index_map is constant).
    weight_bytes = 4 * H * R * dsize
    # Per-row VMEM: 2 in + 2 out pipelined activation buffers, the `up` result
    # in the output dtype, the f32 `down` intermediate and its dtype cast.
    per_row_bytes = (5 * H + R) * dsize + 4 * R + R * dsize

    avail = max(vmem_budget - weight_bytes, row_align * per_row_bytes)
    TM = min(1024, avail // per_row_bytes)
    TM = max(row_align, TM)
    TM = min(TM, _round_up(M, row_align))                 # no oversized tiles
    # Keep >= 2 grid blocks so both v7x TensorCores (parallel axis) stay busy.
    if M >= 2 * row_align:
        TM = min(TM, _round_up(pl.cdiv(M, 2), row_align))
    TM = max(row_align, (TM // row_align) * row_align)    # packing-aligned
    num_blocks = pl.cdiv(M, TM)

    # Guard the extreme-H corner case: never hand the compiler a limit smaller
    # than what the chosen tiling actually needs.
    needed = weight_bytes + TM * per_row_bytes + (2 << 20)
    vmem_limit = max(vmem_limit, needed)

    cost = pl.CostEstimate(
        flops=4 * M * H * R,
        transcendentals=0,
        bytes_accessed=2 * M * H * dsize + 2 * H * R * dsize,
    )

    out = pl.pallas_call(
        _rola_kernel,
        out_shape=jax.ShapeDtypeStruct((M, H), dtype),
        grid_spec=pltpu.PrefetchScalarGridSpec(
            num_scalar_prefetch=0,
            grid=(num_blocks,),
            in_specs=[
                pl.BlockSpec((TM, H), lambda i: (i, 0)),   # x tile (pipelined)
                pl.BlockSpec((H, R), lambda i: (0, 0)),    # Wd^T (resident)
                pl.BlockSpec((R, H), lambda i: (0, 0)),    # Wu^T (resident)
            ],
            out_specs=pl.BlockSpec((TM, H), lambda i: (i, 0)),
        ),
        compiler_params=pltpu.CompilerParams(
            dimension_semantics=("parallel",),
            vmem_limit_bytes=int(vmem_limit),
        ),
        cost_estimate=cost,
    )(x2d, wd_t, wu_t)

    return out.reshape(orig_shape)


if __name__ == "__main__":
    batch, seq, hidden, rank = 2, 8, 32, 8

    key = jax.random.PRNGKey(0)
    kx, kd, ku = jax.random.split(key, 3)

    x = jax.random.normal(kx, (batch, seq, hidden), dtype=jnp.float32)
    # Deterministic synthetic weights (match nn.Linear weight shapes).
    w_down = jax.random.normal(kd, (rank, hidden), dtype=jnp.float32) * 0.05
    w_up = jax.random.normal(ku, (hidden, rank), dtype=jnp.float32) * 0.05

    out = rola_adapter(x, w_down, w_up)
    out = jax.block_until_ready(out)

    # Pure-JAX reference check of the forward semantics (f32 path).
    ref = x + (x @ w_down.T) @ w_up.T
    assert out.shape == x.shape
    assert jnp.allclose(out, ref, atol=1e-5, rtol=1e-5), "f32 mismatch vs reference"

    # bf16 path (weights cast to activation dtype, looser tolerance).
    xb = x.astype(jnp.bfloat16)
    out_b = jax.block_until_ready(rola_adapter(xb, w_down, w_up))
    ref_b = (xb.astype(jnp.float32)
             + (xb.astype(jnp.float32) @ w_down.T) @ w_up.T)
    assert out_b.shape == xb.shape
    assert jnp.allclose(out_b.astype(jnp.float32), ref_b, atol=3e-2, rtol=3e-2), \
        "bf16 mismatch vs reference"

    print("KERNEL_OK")
</pallas_src>

<mosaic_0001>
module attributes {stable_mosaic.version = 11 : i64} {
  func.func @_rola_kernel(%arg0: i32, %arg1: memref<8x32xf32, #tpu.memory_space<vmem>>, %arg2: memref<32x8xf32, #tpu.memory_space<vmem>>, %arg3: memref<8x32xf32, #tpu.memory_space<vmem>>, %arg4: memref<8x32xf32, #tpu.memory_space<vmem>>) attributes {dimension_semantics = [#tpu.dimension_semantics<parallel>], iteration_bounds = array<i64: 2>, scalar_prefetch = 0 : i64, scratch_operands = 0 : i64, tpu.core_type = #tpu.core_type<tc>, window_params = [{transform_indices = @transform_0, window_bounds = array<i64: 8, 32>}, {pipeline_mode = #tpu.pipeline_mode<synchronous>, transform_indices = @transform_1, window_bounds = array<i64: 32, 8>}, {pipeline_mode = #tpu.pipeline_mode<synchronous>, transform_indices = @transform_2, window_bounds = array<i64: 8, 32>}, {transform_indices = @transform_3, window_bounds = array<i64: 8, 32>}]} {
    %c0 = arith.constant 0 : index
    %c0_0 = arith.constant 0 : index
    %0 = vector.load %arg1[%c0, %c0_0] : memref<8x32xf32, #tpu.memory_space<vmem>>, vector<8x32xf32>
    %c0_1 = arith.constant 0 : index
    %c0_2 = arith.constant 0 : index
    %1 = vector.load %arg2[%c0_1, %c0_2] : memref<32x8xf32, #tpu.memory_space<vmem>>, vector<32x8xf32>
    %cst = arith.constant dense<0.000000e+00> : vector<8x8xf32>
    %2 = tpu.matmul %0, %1, %cst {dimension_numbers = #tpu.dot_dimension_numbers<[1], [0], [0], [1], [0, 0, 1, 1], [], []>} : vector<8x32xf32>, vector<32x8xf32>, vector<8x8xf32> -> vector<8x8xf32>
    %c0_3 = arith.constant 0 : index
    %c0_4 = arith.constant 0 : index
    %3 = vector.load %arg3[%c0_3, %c0_4] : memref<8x32xf32, #tpu.memory_space<vmem>>, vector<8x32xf32>
    %cst_5 = arith.constant dense<0.000000e+00> : vector<8x32xf32>
    %4 = tpu.matmul %2, %3, %cst_5 {dimension_numbers = #tpu.dot_dimension_numbers<[1], [0], [0], [1], [0, 0, 1, 1], [], []>} : vector<8x8xf32>, vector<8x32xf32>, vector<8x32xf32> -> vector<8x32xf32>
    %5 = arith.addf %0, %4 : vector<8x32xf32>
    %c0_6 = arith.constant 0 : index
    %c0_7 = arith.constant 0 : index
    %6 = vector.load %arg4[%c0_6, %c0_7] : memref<8x32xf32, #tpu.memory_space<vmem>>, vector<8x32xf32>
    tpu.vector_store %arg4[%c0_6, %c0_7], %5 {strides = array<i32>} : memref<8x32xf32, #tpu.memory_space<vmem>>, vector<8x32xf32>,
    return
  }
  func.func @transform_0(%arg0: i32) -> (i32, i32) {
    %c0_i32 = arith.constant 0 : i32
    %c0_i32_0 = arith.constant 0 : i32
    return %arg0, %c0_i32 : i32, i32
  }
  func.func @transform_1(%arg0: i32) -> (i32, i32) {
    %c0_i32 = arith.constant 0 : i32
    %c0_i32_0 = arith.constant 0 : i32
    %c0_i32_1 = arith.constant 0 : i32
    return %c0_i32, %c0_i32_0 : i32, i32
  }
  func.func @transform_2(%arg0: i32) -> (i32, i32) {
    %c0_i32 = arith.constant 0 : i32
    %c0_i32_0 = arith.constant 0 : i32
    %c0_i32_1 = arith.constant 0 : i32
    return %c0_i32, %c0_i32_0 : i32, i32
  }
  func.func @transform_3(%arg0: i32) -> (i32, i32) {
    %c0_i32 = arith.constant 0 : i32
    %c0_i32_0 = arith.constant 0 : i32
    return %arg0, %c0_i32 : i32, i32
  }
}

</mosaic_0001>

<llo_original>
// kernel: tpu_custom_call.1
$region0: #{tpu_custom_call.1}
  #allocation0 [shape = 'u32[]', space=smem, size = 0x4, offset = 0x4, fixed_abs, tag = 'smem constant byte address 0x4 - core index']
  #allocation1 [shape = 'u32[72,128]{1,0:T(1,128)}', space=vmem, size = 0x9000, scoped, tag = 'internal scratch']
  %s0 = inlined_call_operand.vmem [shape: f32[16,32], index: 0, kind: input, shape index: {}]
  %s1 = inlined_call_operand.vmem [shape: f32[32,8], index: 1, kind: input, shape index: {}]
  %s2 = inlined_call_operand.vmem [shape: f32[8,32], index: 2, kind: input, shape index: {}]
  %s3 = inlined_call_operand.hbm [shape: f32[16,32], index: 3, kind: output, shape index: {}]
  %s4 = sld [smem:[#allocation0]]
  $region45: #{tpu_custom_call.1} parent=0
    _
  %s6 = ssub.s32 1, %s4
  %s7 = scalar_select 0, %s6, %s4
  $region1: #{tpu_custom_call.1} parent=0
    #allocation2 [shape = 'u8[8192]{0}', space=vmem, size = 0x2000, scoped, tag = 'output window, operand 0']
    #allocation3 [shape = 's32[2]{0}', space=sflag, size = 0x8, scoped, tag = 'scoped memory for tpu_custom_call.1']
    %8 = vsyncpa [#allocation3], 0
    %s9 = scalar_lea.sflag [#allocation3], 1
    %10 = vsyncpa %s9, 0
    loop: start=0, step=1, limit=4
    $region2: #{tpu_custom_call.1} parent=1 // loop_pre_header
      _
    $region3: #{tpu_custom_call.1} parent=1 // loop_header
      %s12 = sphi 0, %s16
      %p13 = scmp.ge.s32.totalorder %s12, 4
      %s22 = sphi 0, %s24
      %s25 = sphi 0, %s22
      %s26 = sphi 0, %s25
      %s42 = sphi 0, %s26
      %s46 = sphi 0, %s46
      %s48 = sphi 0, %s46
      %s49 = sphi 0, %s48
      %s63 = sphi 0, %s49
      %s67 = sphi 0, %s67
      %s69 = sphi 0, %s67
      %s70 = sphi 0, %s69
      %s84 = sphi 0, %s70
      %s90 = sphi 0, %s92
      %s93 = sphi 0, %s90
      %s94 = sphi 0, %s93
      %s110 = sphi 0, %s94
    $region4: #{tpu_custom_call.1} parent=1 // loop_header_branch
      %15 = sbr.rel (%p13) target = $region8
    $region5: #{tpu_custom_call.1} parent=1 // loop_body
      %s17 = ssub.s32 %s12, 1
      %s18 = ssub.s32 %s12, 2
      %s19 = sadd.s32 %s12, 1
      %s20 = ssub.s32 %s12, %s19
      %p21 = scmp.eq.s32.totalorder %s20, 0
      %s23 = sadd.s32 %s22, 1
      %s24 = scalar_select %p21, %s22, %s23
      %p27 = pneg %p21
      %p28 = scmp.eq.s32.totalorder %s12, 1
      %p29 = por %p27, %p28
      %p30 = scmp.ne.s32.totalorder %s22, %s25
      %p31 = scmp.eq.s32.totalorder %s12, 0
      %p32 = por %p30, %p31
      %p33 = scmp.ne.s32.totalorder %s22, %s25
      %p34 = scmp.eq.s32.totalorder %s17, 1
      %p35 = por %p33, %p34
      %p36 = scmp.ne.s32.totalorder %s25, %s26
      %p37 = scmp.eq.s32.totalorder %s17, 0
      %p38 = por %p36, %p37
      %p39 = scmp.ne.s32.totalorder %s25, %s26
      %p40 = scmp.eq.s32.totalorder %s18, 1
      %p41 = por %p39, %p40
      %p43 = scmp.ne.s32.totalorder %s26, %s42
      %p44 = scmp.eq.s32.totalorder %s18, 0
      %p45 = por %p43, %p44
      %s47 = sadd.s32 %s46, 1
      %p50 = scmp.eq.s32.totalorder %s12, 1
      %p51 = scmp.ne.s32.totalorder %s46, %s48
      %p52 = scmp.eq.s32.totalorder %s12, 0
      %p53 = por %p51, %p52
      %p54 = scmp.ne.s32.totalorder %s46, %s48
      %p55 = scmp.eq.s32.totalorder %s17, 1
      %p56 = por %p54, %p55
      %p57 = scmp.ne.s32.totalorder %s48, %s49
      %p58 = scmp.eq.s32.totalorder %s17, 0
      %p59 = por %p57, %p58
      %p60 = scmp.ne.s32.totalorder %s48, %s49
      %p61 = scmp.eq.s32.totalorder %s18, 1
      %p62 = por %p60, %p61
      %p64 = scmp.ne.s32.totalorder %s49, %s63
      %p65 = scmp.eq.s32.totalorder %s18, 0
      %p66 = por %p64, %p65
      %s68 = sadd.s32 %s67, 1
      %p71 = scmp.eq.s32.totalorder %s12, 1
      %p72 = scmp.ne.s32.totalorder %s67, %s69
      %p73 = scmp.eq.s32.totalorder %s12, 0
      %p74 = por %p72, %p73
      %p75 = scmp.ne.s32.totalorder %s67, %s69
      %p76 = scmp.eq.s32.totalorder %s17, 1
      %p77 = por %p75, %p76
      %p78 = scmp.ne.s32.totalorder %s69, %s70
      %p79 = scmp.eq.s32.totalorder %s17, 0
      %p80 = por %p78, %p79
      %p81 = scmp.ne.s32.totalorder %s69, %s70
      %p82 = scmp.eq.s32.totalorder %s18, 1
      %p83 = por %p81, %p82
      %p85 = scmp.ne.s32.totalorder %s70, %s84
      %p86 = scmp.eq.s32.totalorder %s18, 0
      %p87 = por %p85, %p86
      %s88 = ssub.s32 %s12, %s19
      %p89 = scmp.eq.s32.totalorder %s88, 0
      %s91 = sadd.s32 %s90, 1
      %s92 = scalar_select %p89, %s90, %s91
      %p95 = pneg %p89
      %p96 = scmp.eq.s32.totalorder %s12, 1
      %p97 = por %p95, %p96
      %p98 = scmp.ne.s32.totalorder %s90, %s93
      %p99 = scmp.eq.s32.totalorder %s12, 0
      %p100 = por %p98, %p99
      %p101 = scmp.ne.s32.totalorder %s90, %s93
      %p102 = scmp.eq.s32.totalorder %s17, 1
      %p103 = por %p101, %p102
      %p104 = scmp.ne.s32.totalorder %s93, %s94
      %p105 = scmp.eq.s32.totalorder %s17, 0
      %p106 = por %p104, %p105
      %p107 = scmp.ne.s32.totalorder %s93, %s94
      %p108 = scmp.eq.s32.totalorder %s18, 1
      %p109 = por %p107, %p108
      %p111 = scmp.ne.s32.totalorder %s94, %s110
      %p112 = scmp.eq.s32.totalorder %s18, 0
      %p113 = por %p111, %p112
      %p114 = scmp.le.s32.totalorder 1, %s12
      %p115 = scmp.lt.s32.totalorder %s12, 3
      %p116 = pnand %p114, %p115
      %p117 = pneg %p116
      // Predicated region
      $region9: #{tpu_custom_call.1} parent=5 // pred_check
        _
      $region10: #{tpu_custom_call.1} parent=5 // pred_check_branch
        %119 = sbr.rel (%p116) target = $region12
      $region11: #{tpu_custom_call.1} parent=5 // pred_region
        %s120 = ssub.s32 %s12, 1
        // Predicated region
        $region13: #{tpu_custom_call.1} parent=11 // pred_check
          %p121 = pneg %p59
        $region14: #{tpu_custom_call.1} parent=11 // pred_check_branch
          %123 = sbr.rel (%p121) target = $region16
        $region15: #{tpu_custom_call.1} parent=11 // pred_region
          _
        $region16: #{tpu_custom_call.1} parent=11 // pred_fallthru
          _
        // Predicated region
        $region17: #{tpu_custom_call.1} parent=11 // pred_check
          %p124 = pneg %p80
        $region18: #{tpu_custom_call.1} parent=11 // pred_check_branch
          %126 = sbr.rel (%p124) target = $region20
        $region19: #{tpu_custom_call.1} parent=11 // pred_region
          _
        $region20: #{tpu_custom_call.1} parent=11 // pred_fallthru
          _
      $region12: #{tpu_custom_call.1} parent=5 // pred_fallthru
        _
      %p127 = scmp.lt.s32.totalorder %s12, 2
      // Predicated region
      $region21: #{tpu_custom_call.1} parent=5 // pred_check
        %p128 = pneg %p127
      $region22: #{tpu_custom_call.1} parent=5 // pred_check_branch
        %130 = sbr.rel (%p128) target = $region24
      $region23: #{tpu_custom_call.1} parent=5 // pred_region
        // Predicated region
        $region25: #{tpu_custom_call.1} parent=23 // pred_check
          %p131 = pneg %p32
        $region26: #{tpu_custom_call.1} parent=23 // pred_check_branch
          %133 = sbr.rel (%p131) target = $region28
        $region27: #{tpu_custom_call.1} parent=23 // pred_region
          %p134 = scmp.lt.s32.totalorder %s12, 1
          %s135 = scalar_select %p134, %s12, 1
          %s136 = smul.addr %s135, 8
          %s137 = scalar_lea.vmem %s0, %s136
        $region28: #{tpu_custom_call.1} parent=23 // pred_fallthru
          _
      $region24: #{tpu_custom_call.1} parent=5 // pred_fallthru
        _
      %p138 = scmp.le.s32.totalorder 1, %s12
      %p139 = scmp.lt.s32.totalorder %s12, 3
      %p140 = pnand %p138, %p139
      %p141 = pneg %p140
      // Predicated region
      $region29: #{tpu_custom_call.1} parent=5 // pred_check
        _
      $region30: #{tpu_custom_call.1} parent=5 // pred_check_branch
        %143 = sbr.rel (%p140) target = $region32
      $region31: #{tpu_custom_call.1} parent=5 // pred_region
        %s144 = ssub.s32 %s12, 1
        %p145 = scmp.lt.s32.totalorder %s17, 1
        %s146 = scalar_select %p145, %s17, 1
        %s147 = smul.addr %s146, 8
        %s148 = scalar_lea.vmem %s0, %s147
        %p149 = pneg %p38
        %p150 = pneg %p35
        %p151 = pneg %p59
        %p152 = pneg %p56
        %p153 = pneg %p80
        %p154 = pneg %p77
        %p155 = pneg %p106
        %p156 = pneg %p103
        %s157 = sand.u32 %s93, 1
        %s158 = scalar_lea.sflag [#allocation3], %s157
        %s159 = sand.u32 %s93, 1
        %s160 = smul.addr %s159, 8
        %s161 = scalar_lea.vmem [#allocation2], %s160
        %p162 = scmp.lt.s32.totalorder %s17, 1
        %s163 = scalar_select %p162, %s17, 1
        %s164 = smul.addr %s163, 8
        %s165 = scalar_lea.vmem %s0, %s164
        %v166 = vld [vmem:[%s165] sm:$0xff]
        %v167 = vld [vmem:[%s1] sm:$0xff]
        %v168 = vld [vmem:[%s1 + $0x8] sm:$0xff]
        %v169 = vld [vmem:[%s1 + $0x10] sm:$0xff]
        %v170 = vld [vmem:[%s1 + $0x18] sm:$0xff]
        %vm171 = vcmask 261120
        %v173 = vsel %vm171, %v166, 0
        %175 = vmatpush.msra.mxu0 0.0
        %176 = vmatpush.msra.mxu0 0.0
        %177 = vmatpush.msra.mxu0 0.0
        %178 = vmatpush.msra.mxu0 0.0
        %179 = vmatpush.msra.mxu0 0.0
        %180 = vmatpush.msra.mxu0 0.0
        %181 = vmatpush.msra.mxu0 0.0
        %182 = vmatpush.msra.mxu0 0.0
        %183 = vmatpush.msra.mxu0 0.0
        %184 = vmatpush.msra.mxu0 0.0
        %185 = vmatpush.msra.mxu0 0.0
        %186 = vmatpush.msra.mxu0 0.0
        %187 = vmatpush.msra.mxu0 %v170
        %188 = vmatpush.msra.mxu0 %v169
        %189 = vmatpush.msra.mxu0 %v168
        %190 = vmatpush.msra.mxu0 %v167
        %191 = vmatmul.f32.gmra.mxu0 %v173
        %v192 = vpop.f32.mrf.mxu0
        %v193 = vadd.f32 0.0, %v192
        %194 = vdwg.mxu0
        %v195 = vld [vmem:[%s2] sm:$0xff]
        %vm196 = vcmask 64512
        %v198 = vsel %vm196, %v193, 0
        %200 = vmatpush.msra.mxu0 0.0
        %201 = vmatpush.msra.mxu0 0.0
        %202 = vmatpush.msra.mxu0 0.0
        %203 = vmatpush.msra.mxu0 0.0
        %204 = vmatpush.msra.mxu0 0.0
        %205 = vmatpush.msra.mxu0 0.0
        %206 = vmatpush.msra.mxu0 0.0
        %207 = vmatpush.msra.mxu0 0.0
        %208 = vmatpush.msra.mxu0 0.0
        %209 = vmatpush.msra.mxu0 0.0
        %210 = vmatpush.msra.mxu0 0.0
        %211 = vmatpush.msra.mxu0 0.0
        %212 = vmatpush.msra.mxu0 0.0
        %213 = vmatpush.msra.mxu0 0.0
        %214 = vmatpush.msra.mxu0 0.0
        %215 = vmatpush.msra.mxu0 %v195
        %216 = vmatmul.f32.gmra.mxu0 %v198
        %v217 = vpop.f32.mrf.mxu0
        %v218 = vadd.f32 0.0, %v217
        %219 = vdwg.mxu0
        %v220 = vadd.f32 %v166, %v218
        %221 = vst.msk [vmem:[%s161] sm:$0xff] %vm171, %v220
        %s222 = sand.u32 %s93, 1
        %s223 = scalar_lea.sflag [#allocation3], %s222
        %s224 = sand.u32 %s93, 1
        %s225 = smul.addr %s224, 8
        %s226 = scalar_lea.vmem [#allocation2], %s225
        // Predicated region
        $region33: #{tpu_custom_call.1} parent=31 // pred_check
          %p227 = pneg %p103
        $region34: #{tpu_custom_call.1} parent=31 // pred_check_branch
          %229 = sbr.rel (%p227) target = $region36
        $region35: #{tpu_custom_call.1} parent=31 // pred_region
          %231 = vsyncadd %s223, 0
          %s232 = smul.addr %s17, 8
          %s233 = scalar_lea.hbm %s3, %s232
          %s235 = sshll.u32 %s226, 4
          %s236 = int_to_ptr.vmem [resolvable:$true] %s235
          %s237 = sshll.u32 %s233, 4
          %s238 = int_to_ptr.hbm [resolvable:$true] %s237
          %240 = dma.vmem_to_hbm [thread:$0]  %s236, 128, %s238, %s223
        $region36: #{tpu_custom_call.1} parent=31 // pred_fallthru
          _
      $region32: #{tpu_custom_call.1} parent=5 // pred_fallthru
        _
      %p241 = scmp.le.s32.totalorder 2, %s12
      // Predicated region
      $region37: #{tpu_custom_call.1} parent=5 // pred_check
        %p242 = pneg %p241
      $region38: #{tpu_custom_call.1} parent=5 // pred_check_branch
        %244 = sbr.rel (%p242) target = $region40
      $region39: #{tpu_custom_call.1} parent=5 // pred_region
        %s245 = ssub.s32 %s12, 2
        // Predicated region
        $region41: #{tpu_custom_call.1} parent=39 // pred_check
          %p246 = pneg %p109
        $region42: #{tpu_custom_call.1} parent=39 // pred_check_branch
          %248 = sbr.rel (%p246) target = $region44
        $region43: #{tpu_custom_call.1} parent=39 // pred_region
          %s249 = sand.u32 %s94, 1
          %s250 = scalar_lea.sflag [#allocation3], %s249
          %s251 = sand.u32 %s94, 1
          %s252 = smul.addr %s251, 8
          %s253 = scalar_lea.vmem [#allocation2], %s252
          %255 = dma.done %s250, 128
        $region44: #{tpu_custom_call.1} parent=39 // pred_fallthru
          _
      $region40: #{tpu_custom_call.1} parent=5 // pred_fallthru
        _
    $region6: #{tpu_custom_call.1} parent=1 // loop_footer
      %s16 = sadd.s32 1, %s12
    $region7: #{tpu_custom_call.1} parent=1 // loop_footer_branch
      %11 = sbr.rel target = $region3
    $region8: #{tpu_custom_call.1} parent=1 // loop_exit
      _
    %256 = vsyncpa [#allocation3], 1
    %s257 = scalar_lea.sflag [#allocation3], 1
    %258 = vsyncpa %s257, 1

</llo_original>
